<compile_context>
chip_gen: v7x
topology: tpu7x:2x2x1
jax: 0.10.0
libtpu: 0.0.40
codegen_flags: <defaults>
</compile_context>

<pallas_src>
import functools

import jax
import jax.numpy as jnp
import numpy as np
from jax.experimental import pallas as pl
from jax.experimental.pallas import tpu as pltpu


def make_kernel(k):
    k = np.asarray(k, dtype=np.float32)
    if k.ndim == 1:
        k = k[None, :] * k[:, None]
    k = k / k.sum()
    return k


def _phase_taps_1d(klen, up, pad0):
    """Polyphase decomposition of a 1-D FIR for zero-insertion upsampling.

    For output phase r (o = q*up + r), returns (c, taps) with taps = [(a, i)]:
        out[q*up + r] += kf[i] * x[q + c + a]      (x index covered by zero halo)
    where i runs over the kernel taps congruent to (pad0 - r) mod up.
    """
    phases = []
    for r in range(up):
        i0 = (pad0 - r) % up
        idxs = list(range(i0, klen, up))
        c = (r + i0 - pad0) // up           # exact integer division
        phases.append((c, [(a, i) for a, i in enumerate(idxs)]))
    return phases


def _upsample_kernel(x_ref, o_ref, *, TH, W, phase_prog):
    """FIR-upsample hot path.

    x_ref : (1, TH + halo_h, Wp, TILE_NC) padded input tile (zero halo), NC on lanes.
    o_ref : (up, up, TH, W, TILE_NC) phase-decomposed output tile.
    phase_prog : static tuple of (rh, rw, taps); taps = ((ho, wo, wgt), ...) with
                 absolute offsets into the padded tile and wgt a Python float
                 immediate (flipped FIR coefficient).
    """
    nc = o_ref.shape[-1]
    # Single load + single f32 cast of the whole block; every tap below is a
    # cheap (vreg-level) value slice of this slab.
    xf = x_ref[...][0].astype(jnp.float32)          # (TH + halo_h, Wp, nc)

    cache = {}

    def tap(ho, wo):
        key = (ho, wo)
        if key not in cache:
            cache[key] = xf[ho:ho + TH, wo:wo + W, :]
        return cache[key]

    for rh, rw, taps in phase_prog:
        acc = None
        for ho, wo, wgt in taps:
            term = tap(ho, wo) * wgt
            acc = term if acc is None else acc + term
        if acc is None:
            acc = jnp.zeros((TH, W, nc), jnp.float32)
        o_ref[rh, rw] = acc.astype(o_ref.dtype)


def upsample_hwnc(x_hwnc, k2d, factor, pad):
    """Channels-last core.

    x_hwnc : (H, W, NC) activations (NC on the lane dim).
    Returns the phase-decomposed output (factor, factor, H, W, NC);
    output pixel (h*factor + rh, w*factor + rw) == out[rh, rw, h, w].
    """
    H, W, NC = x_hwnc.shape
    u = int(factor)
    k2d = np.asarray(k2d, np.float32)
    kh, kw = k2d.shape
    pad0, pad1 = int(pad[0]), int(pad[1])

    Ho = H * u + pad0 + pad1 - kh + 1
    Wo = W * u + pad0 + pad1 - kw + 1
    # The Upsample module parametrization guarantees pad0 + pad1 == k - 1, so
    # every output phase has exactly H (resp. W) rows (cols).
    assert Ho == u * H and Wo == u * W, "expected pad0 + pad1 == kernel_size - 1"

    # upfirdn2d convolves with the flipped kernel (true convolution).
    kf = np.flip(np.asarray(k2d, np.float64))

    ph_h = _phase_taps_1d(kh, u, pad0)
    ph_w = _phase_taps_1d(kw, u, pad0)
    # Static zero-halo so every tap slice stays in range.
    PLh = max(0, max(-c for c, _ in ph_h))
    PRh = max(0, max(c + len(t) - 1 for c, t in ph_h))
    PLw = max(0, max(-c for c, _ in ph_w))
    PRw = max(0, max(c + len(t) - 1 for c, t in ph_w))

    itemsize = x_hwnc.dtype.itemsize
    # Sublane alignment of the padded W extent (8 f32 / 16 bf16 / 32 int8).
    sub = 8 * max(1, 4 // max(1, itemsize))
    Wp = W + PLw + PRw
    PRw += (-Wp) % sub
    Wp = W + PLw + PRw
    halo_h = PLh + PRh
    Hp = H + halo_h

    # Static per-phase tap program with ABSOLUTE offsets and baked float weights.
    phase_prog = []
    uniq_offsets = set()
    for rh, (ch, taps_h) in enumerate(ph_h):
        for rw, (cw, taps_w) in enumerate(ph_w):
            taps = []
            for a, i in taps_h:
                for b, j in taps_w:
                    wgt = float(kf[i, j])
                    if wgt != 0.0:
                        ho, wo = PLh + ch + a, PLw + cw + b
                        taps.append((ho, wo, wgt))
                        uniq_offsets.add((ho, wo))
            phase_prog.append((rh, rw, tuple(taps)))
    phase_prog = tuple(phase_prog)
    n_uniq = max(1, len(uniq_offsets))

    LANE = 128
    NCp = -(-NC // LANE) * LANE

    # ---------------- generation-aware VMEM budget --------------------------
    try:
        vmem_cap = int(pltpu.get_tpu_info().vmem_capacity_bytes)
    except Exception:
        vmem_cap = 64 * 1024 * 1024          # safe for every generation (v7x)
    budget = int(0.40 * vmem_cap)            # ~51 MiB on 128 MiB parts, ~25 MiB on v7x

    def footprint(tnc, TH):
        in_blk = (TH + halo_h) * Wp * tnc * itemsize
        out_blk = u * u * TH * W * tnc * itemsize
        # f32 working set inside the kernel: whole-block cast + cached taps + acc.
        work = ((TH + halo_h) * Wp + (n_uniq + 1) * TH * W) * tnc * 4
        return in_blk, out_blk, 2 * (in_blk + out_blk) + work

    nc_cands = [c for c in (512, 256, 128) if NCp % c == 0]
    h_divs = [d for d in range(H, 0, -1) if H % d == 0]
    best = None
    for tnc in nc_cands:
        for TH_c in h_divs:                  # descending; first fit = largest TH
            _, _, tot_c = footprint(tnc, TH_c)
            if tot_c <= budget:
                key = (TH_c == H, tnc, TH_c)  # prefer full-H (no halo gather), then wide lanes
                if best is None or key > best[0]:
                    best = (key, tnc, TH_c)
                break
    if best is None:
        # Nothing fits the conservative budget; take the smallest configuration
        # and let the compiler do its best.
        # TODO(synk): manual-DMA W tiling for extreme frame sizes.
        tile_nc, TH = 128, 1
    else:
        _, tile_nc, TH = best

    nH = H // TH
    THh = TH + halo_h
    _, _, tot = footprint(tile_nc, TH)
    vmem_limit = max(32 * 1024 * 1024,
                     min(int(1.5 * tot), int(0.9 * vmem_cap)))

    # ---------------- layout & (optional) overlapped H tiles ----------------
    xp = jnp.pad(x_hwnc, ((PLh, PRh), (PLw, PRw), (0, NCp - NC)))
    if nH == 1:
        x_tiles = xp[None]                   # free reshape, no copy
    else:
        # Overlapped H tiles: duplicates only the halo rows per tile.
        x_tiles = jnp.stack(
            [jax.lax.slice_in_dim(xp, t * TH, t * TH + THh, axis=0)
             for t in range(nH)])

    kern = functools.partial(_upsample_kernel, TH=TH, W=W, phase_prog=phase_prog)

    out_r = pl.pallas_call(
        kern,
        out_shape=jax.ShapeDtypeStruct((u, u, H, W, NCp), x_hwnc.dtype),
        grid_spec=pltpu.PrefetchScalarGridSpec(
            num_scalar_prefetch=0,
            grid=(NCp // tile_nc, nH),
            in_specs=[pl.BlockSpec((1, THh, Wp, tile_nc),
                                   lambda n, t: (t, 0, 0, n))],
            out_specs=pl.BlockSpec((u, u, TH, W, tile_nc),
                                   lambda n, t: (0, 0, t, 0, n)),
        ),
        compiler_params=pltpu.CompilerParams(
            dimension_semantics=("parallel", "parallel"),
            vmem_limit_bytes=vmem_limit,
        ),
    )(x_tiles)

    return out_r[..., :NC]


def upsample_pallas(x, k2d, factor, pad):
    """x: (N, C, H, W) (NCHW, as in PyTorch).  Returns (N, C, H*factor, W*factor)."""
    N, C, H, W = x.shape
    u = int(factor)
    # TODO(synk): keep activations channels-last across layers and call
    #             upsample_hwnc directly to avoid these two transposes.
    x_hwnc = jnp.transpose(x, (2, 3, 0, 1)).reshape(H, W, N * C)
    out_r = upsample_hwnc(x_hwnc, k2d, u, pad)            # (u, u, H, W, N*C)
    out = out_r.reshape(u, u, H, W, N, C)
    out = jnp.transpose(out, (4, 5, 2, 0, 3, 1)).reshape(N, C, u * H, u * W)
    return out


def upsample_ref(x, k2d, factor, pad):
    """Pure-JAX reference: depthwise transposed conv (lhs_dilation) with flipped kernel."""
    N, C, H, W = x.shape
    kf = jnp.flip(jnp.asarray(k2d, jnp.float32))
    w = jnp.broadcast_to(kf[None, None], (C, 1) + k2d.shape)
    return jax.lax.conv_general_dilated(
        x, w,
        window_strides=(1, 1),
        padding=((pad[0], pad[1] + factor - 1), (pad[0], pad[1] + factor - 1)),
        lhs_dilation=(factor, factor),
        feature_group_count=C,
        dimension_numbers=("NCHW", "OIHW", "NCHW"),
    )


if __name__ == "__main__":
    # Module parameters: Upsample(kernel=[1,3,3,1], factor=2)
    factor = 2
    k2d = make_kernel([1.0, 3.0, 3.0, 1.0]) * factor ** 2     # (4, 4) buffer
    p = k2d.shape[0] - factor
    pad = ((p + 1) // 2 + factor - 1, p // 2)                  # (2, 1)

    key = jax.random.PRNGKey(0)
    N, C, H, W = 2, 4, 16, 16
    x = jax.random.normal(key, (N, C, H, W), dtype=jnp.float32)

    out = jax.block_until_ready(upsample_pallas(x, k2d, factor, pad))
    ref = upsample_ref(x, k2d, factor, pad)
    assert out.shape == ref.shape == (N, C, 32, 32), (out.shape, ref.shape)
    np.testing.assert_allclose(np.asarray(out), np.asarray(ref), rtol=1e-5, atol=1e-5)

    # Asymmetric FIR keeps the kernel-flip path covered.
    k2d_a = make_kernel([1.0, 2.0, 3.0, 1.0]) * factor ** 2
    out_a = jax.block_until_ready(upsample_pallas(x, k2d_a, factor, pad))
    ref_a = upsample_ref(x, k2d_a, factor, pad)
    np.testing.assert_allclose(np.asarray(out_a), np.asarray(ref_a), rtol=1e-5, atol=1e-5)

    print("KERNEL_OK")
</pallas_src>

<mosaic_0001>
module attributes {stable_mosaic.version = 11 : i64} {
  func.func @_upsample_kernel(%arg0: i32, %arg1: i32, %arg2: memref<1x18x24x128xf32, #tpu.memory_space<vmem>>, %arg3: memref<2x2x16x16x128xf32, #tpu.memory_space<vmem>>) attributes {dimension_semantics = [#tpu.dimension_semantics<parallel>, #tpu.dimension_semantics<parallel>], iteration_bounds = array<i64: 1, 1>, scalar_prefetch = 0 : i64, scratch_operands = 0 : i64, tpu.core_type = #tpu.core_type<tc>, window_params = [{transform_indices = @transform_0, window_bounds = array<i64: 1, 18, 24, 128>}, {transform_indices = @transform_1, window_bounds = array<i64: 2, 2, 16, 16, 128>}]} {
    %c0 = arith.constant 0 : index
    %c0_0 = arith.constant 0 : index
    %c0_1 = arith.constant 0 : index
    %c0_2 = arith.constant 0 : index
    %0 = vector.load %arg2[%c0, %c0_0, %c0_1, %c0_2] : memref<1x18x24x128xf32, #tpu.memory_space<vmem>>, vector<1x18x24x128xf32>
    %1 = vector.shape_cast %0 : vector<1x18x24x128xf32> to vector<18x24x128xf32>
    %2 = vector.extract_strided_slice %1 {offsets = [0, 0, 0], sizes = [16, 16, 128], strides = [1, 1, 1]} : vector<18x24x128xf32> to vector<16x16x128xf32>
    %cst = arith.constant 6.250000e-02 : f32
    %3 = vector.broadcast %cst : f32 to vector<16x16x128xf32>
    %4 = arith.mulf %2, %3 : vector<16x16x128xf32>
    %5 = vector.extract_strided_slice %1 {offsets = [0, 1, 0], sizes = [16, 16, 128], strides = [1, 1, 1]} : vector<18x24x128xf32> to vector<16x16x128xf32>
    %cst_3 = arith.constant 1.875000e-01 : f32
    %6 = vector.broadcast %cst_3 : f32 to vector<16x16x128xf32>
    %7 = arith.mulf %5, %6 : vector<16x16x128xf32>
    %8 = arith.addf %4, %7 : vector<16x16x128xf32>
    %9 = vector.extract_strided_slice %1 {offsets = [1, 0, 0], sizes = [16, 16, 128], strides = [1, 1, 1]} : vector<18x24x128xf32> to vector<16x16x128xf32>
    %cst_4 = arith.constant 1.875000e-01 : f32
    %10 = vector.broadcast %cst_4 : f32 to vector<16x16x128xf32>
    %11 = arith.mulf %9, %10 : vector<16x16x128xf32>
    %12 = arith.addf %8, %11 : vector<16x16x128xf32>
    %13 = vector.extract_strided_slice %1 {offsets = [1, 1, 0], sizes = [16, 16, 128], strides = [1, 1, 1]} : vector<18x24x128xf32> to vector<16x16x128xf32>
    %cst_5 = arith.constant 5.625000e-01 : f32
    %14 = vector.broadcast %cst_5 : f32 to vector<16x16x128xf32>
    %15 = arith.mulf %13, %14 : vector<16x16x128xf32>
    %16 = arith.addf %12, %15 : vector<16x16x128xf32>
    %c0_6 = arith.constant 0 : index
    %c0_7 = arith.constant 0 : index
    %c0_8 = arith.constant 0 : index
    %c0_9 = arith.constant 0 : index
    %c0_10 = arith.constant 0 : index
    %17 = vector.load %arg3[%c0_6, %c0_7, %c0_8, %c0_9, %c0_10] : memref<2x2x16x16x128xf32, #tpu.memory_space<vmem>>, vector<1x1x16x16x128xf32>
    %18 = vector.shape_cast %17 : vector<1x1x16x16x128xf32> to vector<16x16x128xf32>
    %19 = vector.shape_cast %16 : vector<16x16x128xf32> to vector<1x1x16x16x128xf32>
    tpu.vector_store %arg3[%c0_6, %c0_7, %c0_8, %c0_9, %c0_10], %19 {strides = array<i32>} : memref<2x2x16x16x128xf32, #tpu.memory_space<vmem>>, vector<1x1x16x16x128xf32>,
    %cst_11 = arith.constant 1.875000e-01 : f32
    %20 = vector.broadcast %cst_11 : f32 to vector<16x16x128xf32>
    %21 = arith.mulf %5, %20 : vector<16x16x128xf32>
    %22 = vector.extract_strided_slice %1 {offsets = [0, 2, 0], sizes = [16, 16, 128], strides = [1, 1, 1]} : vector<18x24x128xf32> to vector<16x16x128xf32>
    %cst_12 = arith.constant 6.250000e-02 : f32
    %23 = vector.broadcast %cst_12 : f32 to vector<16x16x128xf32>
    %24 = arith.mulf %22, %23 : vector<16x16x128xf32>
    %25 = arith.addf %21, %24 : vector<16x16x128xf32>
    %cst_13 = arith.constant 5.625000e-01 : f32
    %26 = vector.broadcast %cst_13 : f32 to vector<16x16x128xf32>
    %27 = arith.mulf %13, %26 : vector<16x16x128xf32>
    %28 = arith.addf %25, %27 : vector<16x16x128xf32>
    %29 = vector.extract_strided_slice %1 {offsets = [1, 2, 0], sizes = [16, 16, 128], strides = [1, 1, 1]} : vector<18x24x128xf32> to vector<16x16x128xf32>
    %cst_14 = arith.constant 1.875000e-01 : f32
    %30 = vector.broadcast %cst_14 : f32 to vector<16x16x128xf32>
    %31 = arith.mulf %29, %30 : vector<16x16x128xf32>
    %32 = arith.addf %28, %31 : vector<16x16x128xf32>
    %c0_15 = arith.constant 0 : index
    %c1 = arith.constant 1 : index
    %c0_16 = arith.constant 0 : index
    %c0_17 = arith.constant 0 : index
    %c0_18 = arith.constant 0 : index
    %33 = vector.load %arg3[%c0_15, %c1, %c0_16, %c0_17, %c0_18] : memref<2x2x16x16x128xf32, #tpu.memory_space<vmem>>, vector<1x1x16x16x128xf32>
    %34 = vector.shape_cast %33 : vector<1x1x16x16x128xf32> to vector<16x16x128xf32>
    %35 = vector.shape_cast %32 : vector<16x16x128xf32> to vector<1x1x16x16x128xf32>
    tpu.vector_store %arg3[%c0_15, %c1, %c0_16, %c0_17, %c0_18], %35 {strides = array<i32>} : memref<2x2x16x16x128xf32, #tpu.memory_space<vmem>>, vector<1x1x16x16x128xf32>,
    %cst_19 = arith.constant 1.875000e-01 : f32
    %36 = vector.broadcast %cst_19 : f32 to vector<16x16x128xf32>
    %37 = arith.mulf %9, %36 : vector<16x16x128xf32>
    %cst_20 = arith.constant 5.625000e-01 : f32
    %38 = vector.broadcast %cst_20 : f32 to vector<16x16x128xf32>
    %39 = arith.mulf %13, %38 : vector<16x16x128xf32>
    %40 = arith.addf %37, %39 : vector<16x16x128xf32>
    %41 = vector.extract_strided_slice %1 {offsets = [2, 0, 0], sizes = [16, 16, 128], strides = [1, 1, 1]} : vector<18x24x128xf32> to vector<16x16x128xf32>
    %cst_21 = arith.constant 6.250000e-02 : f32
    %42 = vector.broadcast %cst_21 : f32 to vector<16x16x128xf32>
    %43 = arith.mulf %41, %42 : vector<16x16x128xf32>
    %44 = arith.addf %40, %43 : vector<16x16x128xf32>
    %45 = vector.extract_strided_slice %1 {offsets = [2, 1, 0], sizes = [16, 16, 128], strides = [1, 1, 1]} : vector<18x24x128xf32> to vector<16x16x128xf32>
    %cst_22 = arith.constant 1.875000e-01 : f32
    %46 = vector.broadcast %cst_22 : f32 to vector<16x16x128xf32>
    %47 = arith.mulf %45, %46 : vector<16x16x128xf32>
    %48 = arith.addf %44, %47 : vector<16x16x128xf32>
    %c1_23 = arith.constant 1 : index
    %c0_24 = arith.constant 0 : index
    %c0_25 = arith.constant 0 : index
    %c0_26 = arith.constant 0 : index
    %c0_27 = arith.constant 0 : index
    %49 = vector.load %arg3[%c1_23, %c0_24, %c0_25, %c0_26, %c0_27] : memref<2x2x16x16x128xf32, #tpu.memory_space<vmem>>, vector<1x1x16x16x128xf32>
    %50 = vector.shape_cast %49 : vector<1x1x16x16x128xf32> to vector<16x16x128xf32>
    %51 = vector.shape_cast %48 : vector<16x16x128xf32> to vector<1x1x16x16x128xf32>
    tpu.vector_store %arg3[%c1_23, %c0_24, %c0_25, %c0_26, %c0_27], %51 {strides = array<i32>} : memref<2x2x16x16x128xf32, #tpu.memory_space<vmem>>, vector<1x1x16x16x128xf32>,
    %cst_28 = arith.constant 5.625000e-01 : f32
    %52 = vector.broadcast %cst_28 : f32 to vector<16x16x128xf32>
    %53 = arith.mulf %13, %52 : vector<16x16x128xf32>
    %cst_29 = arith.constant 1.875000e-01 : f32
    %54 = vector.broadcast %cst_29 : f32 to vector<16x16x128xf32>
    %55 = arith.mulf %29, %54 : vector<16x16x128xf32>
    %56 = arith.addf %53, %55 : vector<16x16x128xf32>
    %cst_30 = arith.constant 1.875000e-01 : f32
    %57 = vector.broadcast %cst_30 : f32 to vector<16x16x128xf32>
    %58 = arith.mulf %45, %57 : vector<16x16x128xf32>
    %59 = arith.addf %56, %58 : vector<16x16x128xf32>
    %60 = vector.extract_strided_slice %1 {offsets = [2, 2, 0], sizes = [16, 16, 128], strides = [1, 1, 1]} : vector<18x24x128xf32> to vector<16x16x128xf32>
    %cst_31 = arith.constant 6.250000e-02 : f32
    %61 = vector.broadcast %cst_31 : f32 to vector<16x16x128xf32>
    %62 = arith.mulf %60, %61 : vector<16x16x128xf32>
    %63 = arith.addf %59, %62 : vector<16x16x128xf32>
    %c1_32 = arith.constant 1 : index
    %c1_33 = arith.constant 1 : index
    %c0_34 = arith.constant 0 : index
    %c0_35 = arith.constant 0 : index
    %c0_36 = arith.constant 0 : index
    %64 = vector.load %arg3[%c1_32, %c1_33, %c0_34, %c0_35, %c0_36] : memref<2x2x16x16x128xf32, #tpu.memory_space<vmem>>, vector<1x1x16x16x128xf32>
    %65 = vector.shape_cast %64 : vector<1x1x16x16x128xf32> to vector<16x16x128xf32>
    %66 = vector.shape_cast %63 : vector<16x16x128xf32> to vector<1x1x16x16x128xf32>
    tpu.vector_store %arg3[%c1_32, %c1_33, %c0_34, %c0_35, %c0_36], %66 {strides = array<i32>} : memref<2x2x16x16x128xf32, #tpu.memory_space<vmem>>, vector<1x1x16x16x128xf32>,
    return
  }
  func.func @transform_0(%arg0: i32, %arg1: i32) -> (i32, i32, i32, i32) {
    %c0_i32 = arith.constant 0 : i32
    %c0_i32_0 = arith.constant 0 : i32
    %c0_i32_1 = arith.constant 0 : i32
    return %arg1, %c0_i32, %c0_i32_0, %arg0 : i32, i32, i32, i32
  }
  func.func @transform_1(%arg0: i32, %arg1: i32) -> (i32, i32, i32, i32, i32) {
    %c0_i32 = arith.constant 0 : i32
    %c0_i32_0 = arith.constant 0 : i32
    %c0_i32_1 = arith.constant 0 : i32
    %c0_i32_2 = arith.constant 0 : i32
    return %c0_i32, %c0_i32_0, %arg1, %c0_i32_1, %arg0 : i32, i32, i32, i32, i32
  }
}

</mosaic_0001>

<llo_original>
// kernel: tpu_custom_call.1
$region0: #{tpu_custom_call.1}
  #allocation0 [shape = 'u32[]', space=smem, size = 0x4, offset = 0x4, fixed_abs, tag = 'smem constant byte address 0x4 - core index']
  #allocation1 [shape = 'u32[144,128]{1,0:T(1,128)}', space=vmem, size = 0x12000, scoped, tag = 'internal scratch']
  %s0 = inlined_call_operand.hbm [shape: f32[1,18,24,128], index: 0, kind: input, shape index: {}]
  %s1 = inlined_call_operand.hbm [shape: f32[2,2,16,16,128], index: 1, kind: output, shape index: {}]
  %s2 = sld [smem:[#allocation0]]
  $region18: #{tpu_custom_call.1} parent=0
    _
  %s4 = ssub.s32 1, %s2
  %s5 = scalar_select 0, %s4, %s2
  $region1: #{tpu_custom_call.1} parent=0
    #allocation2 [shape = 'u8[221184]{0}', space=vmem, size = 0x36000, scoped, tag = 'input window, operand 0, single buffered']
    #allocation3 [shape = 's32[1]{0}', space=sflag, size = 0x4, scoped, tag = 'scoped memory for tpu_custom_call.1']
    #allocation4 [shape = 's32[1]{0}', space=sflag, size = 0x4, scoped, tag = 'scoped memory for tpu_custom_call.1']
    #allocation5 [shape = 'u8[524288]{0}', space=vmem, size = 0x80000, scoped, tag = 'output window, operand 0, single buffered']
    %6 = vsyncpa [#allocation3], 0
    %7 = vsyncpa [#allocation4], 0
    // Predicated region
    $region2: #{tpu_custom_call.1} parent=1 // pred_check
      _
    $region3: #{tpu_custom_call.1} parent=1 // pred_check_branch
      %9 = sbr.rel (0) target = $region5
    $region4: #{tpu_custom_call.1} parent=1 // pred_region
      %s11 = ssub.s32 6912, 6912
      %12 = vsyncadd [#allocation3], %s11
      %s13 = sshll.u32 [#allocation2], 4
      %s14 = int_to_ptr.vmem [resolvable:$true] %s13
      %19 = dma.hbm_to_vmem [thread:$0]  %s0, 6912, %s14, [#allocation3], 128, 128, 8
    $region5: #{tpu_custom_call.1} parent=1 // pred_fallthru
      _
    // Predicated region
    $region6: #{tpu_custom_call.1} parent=1 // pred_check
      _
    $region7: #{tpu_custom_call.1} parent=1 // pred_check_branch
      %21 = sbr.rel (0) target = $region9
    $region8: #{tpu_custom_call.1} parent=1 // pred_region
      %22 = dma.done [#allocation3], 6912
    $region9: #{tpu_custom_call.1} parent=1 // pred_fallthru
      _
    %v23 = vld [vmem:[#allocation2] sm:$0xff]
    %v24 = vld [vmem:[#allocation2 + $0x8] sm:$0xff]
    %v25 = vld [vmem:[#allocation2 + $0x10] sm:$0xff]
    %v26 = vld [vmem:[#allocation2 + $0x18] sm:$0xff]
    %v27 = vld [vmem:[#allocation2 + $0x20] sm:$0xff]
    %v28 = vld [vmem:[#allocation2 + $0x28] sm:$0xff]
    %v29 = vld [vmem:[#allocation2 + $0x30] sm:$0xff]
    %v30 = vld [vmem:[#allocation2 + $0x38] sm:$0xff]
    %v31 = vld [vmem:[#allocation2 + $0x40] sm:$0xff]
    %v32 = vld [vmem:[#allocation2 + $0x48] sm:$0xff]
    %v33 = vld [vmem:[#allocation2 + $0x50] sm:$0xff]
    %v34 = vld [vmem:[#allocation2 + $0x58] sm:$0xff]
    %v35 = vld [vmem:[#allocation2 + $0x60] sm:$0xff]
    %v36 = vld [vmem:[#allocation2 + $0x68] sm:$0xff]
    %v37 = vld [vmem:[#allocation2 + $0x70] sm:$0xff]
    %v38 = vld [vmem:[#allocation2 + $0x78] sm:$0xff]
    %v39 = vld [vmem:[#allocation2 + $0x80] sm:$0xff]
    %v40 = vld [vmem:[#allocation2 + $0x88] sm:$0xff]
    %v41 = vld [vmem:[#allocation2 + $0x90] sm:$0xff]
    %v42 = vld [vmem:[#allocation2 + $0x98] sm:$0xff]
    %v43 = vld [vmem:[#allocation2 + $0xa0] sm:$0xff]
    %v44 = vld [vmem:[#allocation2 + $0xa8] sm:$0xff]
    %v45 = vld [vmem:[#allocation2 + $0xb0] sm:$0xff]
    %v46 = vld [vmem:[#allocation2 + $0xb8] sm:$0xff]
    %v47 = vld [vmem:[#allocation2 + $0xc0] sm:$0xff]
    %v48 = vld [vmem:[#allocation2 + $0xc8] sm:$0xff]
    %v49 = vld [vmem:[#allocation2 + $0xd0] sm:$0xff]
    %v50 = vld [vmem:[#allocation2 + $0xd8] sm:$0xff]
    %v51 = vld [vmem:[#allocation2 + $0xe0] sm:$0xff]
    %v52 = vld [vmem:[#allocation2 + $0xe8] sm:$0xff]
    %v53 = vld [vmem:[#allocation2 + $0xf0] sm:$0xff]
    %v54 = vld [vmem:[#allocation2 + $0xf8] sm:$0xff]
    %v55 = vld [vmem:[#allocation2 + $0x100] sm:$0xff]
    %v56 = vld [vmem:[#allocation2 + $0x108] sm:$0xff]
    %v57 = vld [vmem:[#allocation2 + $0x110] sm:$0xff]
    %v58 = vld [vmem:[#allocation2 + $0x118] sm:$0xff]
    %v59 = vld [vmem:[#allocation2 + $0x120] sm:$0xff]
    %v60 = vld [vmem:[#allocation2 + $0x128] sm:$0xff]
    %v61 = vld [vmem:[#allocation2 + $0x130] sm:$0xff]
    %v62 = vld [vmem:[#allocation2 + $0x138] sm:$0xff]
    %v63 = vld [vmem:[#allocation2 + $0x140] sm:$0xff]
    %v64 = vld [vmem:[#allocation2 + $0x148] sm:$0xff]
    %v65 = vld [vmem:[#allocation2 + $0x150] sm:$0xff]
    %v66 = vld [vmem:[#allocation2 + $0x158] sm:$0xff]
    %v67 = vld [vmem:[#allocation2 + $0x160] sm:$0xff]
    %v68 = vld [vmem:[#allocation2 + $0x168] sm:$0xff]
    %v69 = vld [vmem:[#allocation2 + $0x170] sm:$0xff]
    %v70 = vld [vmem:[#allocation2 + $0x178] sm:$0xff]
    %v71 = vld [vmem:[#allocation2 + $0x180] sm:$0xff]
    %v72 = vld [vmem:[#allocation2 + $0x188] sm:$0xff]
    %v73 = vld [vmem:[#allocation2 + $0x190] sm:$0xff]
    %v74 = vld [vmem:[#allocation2 + $0x198] sm:$0xff]
    %v75 = vld [vmem:[#allocation2 + $0x1a0] sm:$0xff]
    %v76 = vld [vmem:[#allocation2 + $0x1a8] sm:$0xff]
    %v77 = vmul.f32 %v23, 0.0625
    %v78 = vmul.f32 %v24, 0.0625
    %v79 = vmul.f32 %v26, 0.0625
    %v80 = vmul.f32 %v27, 0.0625
    %v81 = vmul.f32 %v29, 0.0625
    %v82 = vmul.f32 %v30, 0.0625
    %v83 = vmul.f32 %v32, 0.0625
    %v84 = vmul.f32 %v33, 0.0625
    %v85 = vmul.f32 %v35, 0.0625
    %v86 = vmul.f32 %v36, 0.0625
    %v87 = vmul.f32 %v38, 0.0625
    %v88 = vmul.f32 %v39, 0.0625
    %v89 = vmul.f32 %v41, 0.0625
    %v90 = vmul.f32 %v42, 0.0625
    %v91 = vmul.f32 %v44, 0.0625
    %v92 = vmul.f32 %v45, 0.0625
    %v93 = vmul.f32 %v47, 0.0625
    %v94 = vmul.f32 %v48, 0.0625
    %v95 = vmul.f32 %v50, 0.0625
    %v96 = vmul.f32 %v51, 0.0625
    %v97 = vmul.f32 %v53, 0.0625
    %v98 = vmul.f32 %v54, 0.0625
    %v99 = vmul.f32 %v56, 0.0625
    %v100 = vmul.f32 %v57, 0.0625
    %v101 = vmul.f32 %v59, 0.0625
    %v102 = vmul.f32 %v60, 0.0625
    %v103 = vmul.f32 %v62, 0.0625
    %v104 = vmul.f32 %v63, 0.0625
    %v105 = vmul.f32 %v65, 0.0625
    %v106 = vmul.f32 %v66, 0.0625
    %v107 = vmul.f32 %v68, 0.0625
    %v108 = vmul.f32 %v69, 0.0625
    %v109 = vmul.f32 %v23, 0.1875
    %v110 = vmul.f32 %v24, 0.1875
    %v111 = vmul.f32 %v25, 0.1875
    %v112 = vmul.f32 %v26, 0.1875
    %v113 = vmul.f32 %v27, 0.1875
    %v114 = vmul.f32 %v28, 0.1875
    %v115 = vmul.f32 %v29, 0.1875
    %v116 = vmul.f32 %v30, 0.1875
    %v117 = vmul.f32 %v31, 0.1875
    %v118 = vmul.f32 %v32, 0.1875
    %v119 = vmul.f32 %v33, 0.1875
    %v120 = vmul.f32 %v34, 0.1875
    %v121 = vmul.f32 %v35, 0.1875
    %v122 = vmul.f32 %v36, 0.1875
    %v123 = vmul.f32 %v37, 0.1875
    %v124 = vmul.f32 %v38, 0.1875
    %v125 = vmul.f32 %v39, 0.1875
    %v126 = vmul.f32 %v40, 0.1875
    %v127 = vmul.f32 %v41, 0.1875
    %v128 = vmul.f32 %v42, 0.1875
    %v129 = vmul.f32 %v43, 0.1875
    %v130 = vmul.f32 %v44, 0.1875
    %v131 = vmul.f32 %v45, 0.1875
    %v132 = vmul.f32 %v46, 0.1875
    %v133 = vmul.f32 %v47, 0.1875
    %v134 = vmul.f32 %v48, 0.1875
    %v135 = vmul.f32 %v49, 0.1875
    %v136 = vmul.f32 %v50, 0.1875
    %v137 = vmul.f32 %v51, 0.1875
    %v138 = vmul.f32 %v52, 0.1875
    %v139 = vmul.f32 %v53, 0.1875
    %v140 = vmul.f32 %v54, 0.1875
    %v141 = vmul.f32 %v55, 0.1875
    %v142 = vmul.f32 %v56, 0.1875
    %v143 = vmul.f32 %v57, 0.1875
    %v144 = vmul.f32 %v58, 0.1875
    %v145 = vmul.f32 %v59, 0.1875
    %v146 = vmul.f32 %v60, 0.1875
    %v147 = vmul.f32 %v61, 0.1875
    %v148 = vmul.f32 %v62, 0.1875
    %v149 = vmul.f32 %v63, 0.1875
    %v150 = vmul.f32 %v64, 0.1875
    %v151 = vmul.f32 %v65, 0.1875
    %v152 = vmul.f32 %v66, 0.1875
    %v153 = vmul.f32 %v67, 0.1875
    %v154 = vmul.f32 %v68, 0.1875
    %v155 = vmul.f32 %v69, 0.1875
    %v156 = vmul.f32 %v70, 0.1875
    %vm205 = vcmask 1046528
    %v206 = vrot.slane %v109, 1
    %v207 = vrot.slane %v110, 1
    %v208 = vsel %vm205, %v206, %v207
    %v209 = vrot.slane %v111, 1
    %v210 = vsel %vm205, %v207, %v209
    %v211 = vrot.slane %v112, 1
    %v212 = vrot.slane %v113, 1
    %v213 = vsel %vm205, %v211, %v212
    %v214 = vrot.slane %v114, 1
    %v215 = vsel %vm205, %v212, %v214
    %v216 = vrot.slane %v115, 1
    %v217 = vrot.slane %v116, 1
    %v218 = vsel %vm205, %v216, %v217
    %v219 = vrot.slane %v117, 1
    %v220 = vsel %vm205, %v217, %v219
    %v221 = vrot.slane %v118, 1
    %v222 = vrot.slane %v119, 1
    %v223 = vsel %vm205, %v221, %v222
    %v224 = vrot.slane %v120, 1
    %v225 = vsel %vm205, %v222, %v224
    %v226 = vrot.slane %v121, 1
    %v227 = vrot.slane %v122, 1
    %v228 = vsel %vm205, %v226, %v227
    %v229 = vrot.slane %v123, 1
    %v230 = vsel %vm205, %v227, %v229
    %v231 = vrot.slane %v124, 1
    %v232 = vrot.slane %v125, 1
    %v233 = vsel %vm205, %v231, %v232
    %v234 = vrot.slane %v126, 1
    %v235 = vsel %vm205, %v232, %v234
    %v236 = vrot.slane %v127, 1
    %v237 = vrot.slane %v128, 1
    %v238 = vsel %vm205, %v236, %v237
    %v239 = vrot.slane %v129, 1
    %v240 = vsel %vm205, %v237, %v239
    %v241 = vrot.slane %v130, 1
    %v242 = vrot.slane %v131, 1
    %v243 = vsel %vm205, %v241, %v242
    %v244 = vrot.slane %v132, 1
    %v245 = vsel %vm205, %v242, %v244
    %v246 = vrot.slane %v133, 1
    %v247 = vrot.slane %v134, 1
    %v248 = vsel %vm205, %v246, %v247
    %v249 = vrot.slane %v135, 1
    %v250 = vsel %vm205, %v247, %v249
    %v251 = vrot.slane %v136, 1
    %v252 = vrot.slane %v137, 1
    %v253 = vsel %vm205, %v251, %v252
    %v254 = vrot.slane %v138, 1
    %v255 = vsel %vm205, %v252, %v254
    %v256 = vrot.slane %v139, 1
    %v257 = vrot.slane %v140, 1
    %v258 = vsel %vm205, %v256, %v257
    %v259 = vrot.slane %v141, 1
    %v260 = vsel %vm205, %v257, %v259
    %v261 = vrot.slane %v142, 1
    %v262 = vrot.slane %v143, 1
    %v263 = vsel %vm205, %v261, %v262
    %v264 = vrot.slane %v144, 1
    %v265 = vsel %vm205, %v262, %v264
    %v266 = vrot.slane %v145, 1
    %v267 = vrot.slane %v146, 1
    %v268 = vsel %vm205, %v266, %v267
    %v269 = vrot.slane %v147, 1
    %v270 = vsel %vm205, %v267, %v269
    %v271 = vrot.slane %v148, 1
    %v272 = vrot.slane %v149, 1
    %v273 = vsel %vm205, %v271, %v272
    %v274 = vrot.slane %v150, 1
    %v275 = vsel %vm205, %v272, %v274
    %v276 = vrot.slane %v151, 1
    %v277 = vrot.slane %v152, 1
    %v278 = vsel %vm205, %v276, %v277
    %v279 = vrot.slane %v153, 1
    %v280 = vsel %vm205, %v277, %v279
    %v281 = vrot.slane %v154, 1
    %v282 = vrot.slane %v155, 1
    %v283 = vsel %vm205, %v281, %v282
    %v284 = vrot.slane %v156, 1
    %v285 = vsel %vm205, %v282, %v284
    %v318 = vadd.f32 %v77, %v208
    %v319 = vadd.f32 %v78, %v210
    %v320 = vadd.f32 %v79, %v213
    %v321 = vadd.f32 %v80, %v215
    %v322 = vadd.f32 %v81, %v218
    %v323 = vadd.f32 %v82, %v220
    %v324 = vadd.f32 %v83, %v223
    %v325 = vadd.f32 %v84, %v225
    %v326 = vadd.f32 %v85, %v228
    %v327 = vadd.f32 %v86, %v230
    %v328 = vadd.f32 %v87, %v233
    %v329 = vadd.f32 %v88, %v235
    %v330 = vadd.f32 %v89, %v238
    %v331 = vadd.f32 %v90, %v240
    %v332 = vadd.f32 %v91, %v243
    %v333 = vadd.f32 %v92, %v245
    %v334 = vadd.f32 %v93, %v248
    %v335 = vadd.f32 %v94, %v250
    %v336 = vadd.f32 %v95, %v253
    %v337 = vadd.f32 %v96, %v255
    %v338 = vadd.f32 %v97, %v258
    %v339 = vadd.f32 %v98, %v260
    %v340 = vadd.f32 %v99, %v263
    %v341 = vadd.f32 %v100, %v265
    %v342 = vadd.f32 %v101, %v268
    %v343 = vadd.f32 %v102, %v270
    %v344 = vadd.f32 %v103, %v273
    %v345 = vadd.f32 %v104, %v275
    %v346 = vadd.f32 %v105, %v278
    %v347 = vadd.f32 %v106, %v280
    %v348 = vadd.f32 %v107, %v283
    %v349 = vadd.f32 %v108, %v285
    %v350 = vmul.f32 %v71, 0.1875
    %v351 = vmul.f32 %v72, 0.1875
    %v352 = vadd.f32 %v318, %v112
    %v353 = vadd.f32 %v319, %v113
    %v354 = vadd.f32 %v320, %v115
    %v355 = vadd.f32 %v321, %v116
    %v356 = vadd.f32 %v322, %v118
    %v357 = vadd.f32 %v323, %v119
    %v358 = vadd.f32 %v324, %v121
    %v359 = vadd.f32 %v325, %v122
    %v360 = vadd.f32 %v326, %v124
    %v361 = vadd.f32 %v327, %v125
    %v362 = vadd.f32 %v328, %v127
    %v363 = vadd.f32 %v329, %v128
    %v364 = vadd.f32 %v330, %v130
    %v365 = vadd.f32 %v331, %v131
    %v366 = vadd.f32 %v332, %v133
    %v367 = vadd.f32 %v333, %v134
    %v368 = vadd.f32 %v334, %v136
    %v369 = vadd.f32 %v335, %v137
    %v370 = vadd.f32 %v336, %v139
    %v371 = vadd.f32 %v337, %v140
    %v372 = vadd.f32 %v338, %v142
    %v373 = vadd.f32 %v339, %v143
    %v374 = vadd.f32 %v340, %v145
    %v375 = vadd.f32 %v341, %v146
    %v376 = vadd.f32 %v342, %v148
    %v377 = vadd.f32 %v343, %v149
    %v378 = vadd.f32 %v344, %v151
    %v379 = vadd.f32 %v345, %v152
    %v380 = vadd.f32 %v346, %v154
    %v381 = vadd.f32 %v347, %v155
    %v382 = vadd.f32 %v348, %v350
    %v383 = vadd.f32 %v349, %v351
    %v384 = vmul.f32 %v26, 0.5625
    %v385 = vmul.f32 %v27, 0.5625
    %v386 = vmul.f32 %v28, 0.5625
    %v387 = vmul.f32 %v29, 0.5625
    %v388 = vmul.f32 %v30, 0.5625
    %v389 = vmul.f32 %v31, 0.5625
    %v390 = vmul.f32 %v32, 0.5625
    %v391 = vmul.f32 %v33, 0.5625
    %v392 = vmul.f32 %v34, 0.5625
    %v393 = vmul.f32 %v35, 0.5625
    %v394 = vmul.f32 %v36, 0.5625
    %v395 = vmul.f32 %v37, 0.5625
    %v396 = vmul.f32 %v38, 0.5625
    %v397 = vmul.f32 %v39, 0.5625
    %v398 = vmul.f32 %v40, 0.5625
    %v399 = vmul.f32 %v41, 0.5625
    %v400 = vmul.f32 %v42, 0.5625
    %v401 = vmul.f32 %v43, 0.5625
    %v402 = vmul.f32 %v44, 0.5625
    %v403 = vmul.f32 %v45, 0.5625
    %v404 = vmul.f32 %v46, 0.5625
    %v405 = vmul.f32 %v47, 0.5625
    %v406 = vmul.f32 %v48, 0.5625
    %v407 = vmul.f32 %v49, 0.5625
    %v408 = vmul.f32 %v50, 0.5625
    %v409 = vmul.f32 %v51, 0.5625
    %v410 = vmul.f32 %v52, 0.5625
    %v411 = vmul.f32 %v53, 0.5625
    %v412 = vmul.f32 %v54, 0.5625
    %v413 = vmul.f32 %v55, 0.5625
    %v414 = vmul.f32 %v56, 0.5625
    %v415 = vmul.f32 %v57, 0.5625
    %v416 = vmul.f32 %v58, 0.5625
    %v417 = vmul.f32 %v59, 0.5625
    %v418 = vmul.f32 %v60, 0.5625
    %v419 = vmul.f32 %v61, 0.5625
    %v420 = vmul.f32 %v62, 0.5625
    %v421 = vmul.f32 %v63, 0.5625
    %v422 = vmul.f32 %v64, 0.5625
    %v423 = vmul.f32 %v65, 0.5625
    %v424 = vmul.f32 %v66, 0.5625
    %v425 = vmul.f32 %v67, 0.5625
    %v426 = vmul.f32 %v68, 0.5625
    %v427 = vmul.f32 %v69, 0.5625
    %v428 = vmul.f32 %v70, 0.5625
    %v429 = vmul.f32 %v71, 0.5625
    %v430 = vmul.f32 %v72, 0.5625
    %v431 = vmul.f32 %v73, 0.5625
    %v480 = vrot.slane %v384, 1
    %v481 = vrot.slane %v385, 1
    %v482 = vsel %vm205, %v480, %v481
    %v483 = vrot.slane %v386, 1
    %v484 = vsel %vm205, %v481, %v483
    %v485 = vrot.slane %v387, 1
    %v486 = vrot.slane %v388, 1
    %v487 = vsel %vm205, %v485, %v486
    %v488 = vrot.slane %v389, 1
    %v489 = vsel %vm205, %v486, %v488
    %v490 = vrot.slane %v390, 1
    %v491 = vrot.slane %v391, 1
    %v492 = vsel %vm205, %v490, %v491
    %v493 = vrot.slane %v392, 1
    %v494 = vsel %vm205, %v491, %v493
    %v495 = vrot.slane %v393, 1
    %v496 = vrot.slane %v394, 1
    %v497 = vsel %vm205, %v495, %v496
    %v498 = vrot.slane %v395, 1
    %v499 = vsel %vm205, %v496, %v498
    %v500 = vrot.slane %v396, 1
    %v501 = vrot.slane %v397, 1
    %v502 = vsel %vm205, %v500, %v501
    %v503 = vrot.slane %v398, 1
    %v504 = vsel %vm205, %v501, %v503
    %v505 = vrot.slane %v399, 1
    %v506 = vrot.slane %v400, 1
    %v507 = vsel %vm205, %v505, %v506
    %v508 = vrot.slane %v401, 1
    %v509 = vsel %vm205, %v506, %v508
    %v510 = vrot.slane %v402, 1
    %v511 = vrot.slane %v403, 1
    %v512 = vsel %vm205, %v510, %v511
    %v513 = vrot.slane %v404, 1
    %v514 = vsel %vm205, %v511, %v513
    %v515 = vrot.slane %v405, 1
    %v516 = vrot.slane %v406, 1
    %v517 = vsel %vm205, %v515, %v516
    %v518 = vrot.slane %v407, 1
    %v519 = vsel %vm205, %v516, %v518
    %v520 = vrot.slane %v408, 1
    %v521 = vrot.slane %v409, 1
    %v522 = vsel %vm205, %v520, %v521
    %v523 = vrot.slane %v410, 1
    %v524 = vsel %vm205, %v521, %v523
    %v525 = vrot.slane %v411, 1
    %v526 = vrot.slane %v412, 1
    %v527 = vsel %vm205, %v525, %v526
    %v528 = vrot.slane %v413, 1
    %v529 = vsel %vm205, %v526, %v528
    %v530 = vrot.slane %v414, 1
    %v531 = vrot.slane %v415, 1
    %v532 = vsel %vm205, %v530, %v531
    %v533 = vrot.slane %v416, 1
    %v534 = vsel %vm205, %v531, %v533
    %v535 = vrot.slane %v417, 1
    %v536 = vrot.slane %v418, 1
    %v537 = vsel %vm205, %v535, %v536
    %v538 = vrot.slane %v419, 1
    %v539 = vsel %vm205, %v536, %v538
    %v540 = vrot.slane %v420, 1
    %v541 = vrot.slane %v421, 1
    %v542 = vsel %vm205, %v540, %v541
    %v543 = vrot.slane %v422, 1
    %v544 = vsel %vm205, %v541, %v543
    %v545 = vrot.slane %v423, 1
    %v546 = vrot.slane %v424, 1
    %v547 = vsel %vm205, %v545, %v546
    %v548 = vrot.slane %v425, 1
    %v549 = vsel %vm205, %v546, %v548
    %v550 = vrot.slane %v426, 1
    %v551 = vrot.slane %v427, 1
    %v552 = vsel %vm205, %v550, %v551
    %v553 = vrot.slane %v428, 1
    %v554 = vsel %vm205, %v551, %v553
    %v555 = vrot.slane %v429, 1
    %v556 = vrot.slane %v430, 1
    %v557 = vsel %vm205, %v555, %v556
    %v558 = vrot.slane %v431, 1
    %v559 = vsel %vm205, %v556, %v558
    %v592 = vadd.f32 %v352, %v482
    %v593 = vadd.f32 %v353, %v484
    %v594 = vadd.f32 %v354, %v487
    %v595 = vadd.f32 %v355, %v489
    %v596 = vadd.f32 %v356, %v492
    %v597 = vadd.f32 %v357, %v494
    %v598 = vadd.f32 %v358, %v497
    %v599 = vadd.f32 %v359, %v499
    %v600 = vadd.f32 %v360, %v502
    %v601 = vadd.f32 %v361, %v504
    %v602 = vadd.f32 %v362, %v507
    %v603 = vadd.f32 %v363, %v509
    %v604 = vadd.f32 %v364, %v512
    %v605 = vadd.f32 %v365, %v514
    %v606 = vadd.f32 %v366, %v517
    %v607 = vadd.f32 %v367, %v519
    %v608 = vadd.f32 %v368, %v522
    %v609 = vadd.f32 %v369, %v524
    %v610 = vadd.f32 %v370, %v527
    %v611 = vadd.f32 %v371, %v529
    %v612 = vadd.f32 %v372, %v532
    %v613 = vadd.f32 %v373, %v534
    %v614 = vadd.f32 %v374, %v537
    %v615 = vadd.f32 %v375, %v539
    %v616 = vadd.f32 %v376, %v542
    %v617 = vadd.f32 %v377, %v544
    %v618 = vadd.f32 %v378, %v547
    %v619 = vadd.f32 %v379, %v549
    %v620 = vadd.f32 %v380, %v552
    %v621 = vadd.f32 %v381, %v554
    %v622 = vadd.f32 %v382, %v557
    %v623 = vadd.f32 %v383, %v559
    %624 = vst [vmem:[#allocation5] sm:$0xff] %v592
    %625 = vst [vmem:[#allocation5 + $0x8] sm:$0xff] %v593
    %626 = vst [vmem:[#allocation5 + $0x10] sm:$0xff] %v594
    %627 = vst [vmem:[#allocation5 + $0x18] sm:$0xff] %v595
    %628 = vst [vmem:[#allocation5 + $0x20] sm:$0xff] %v596
    %629 = vst [vmem:[#allocation5 + $0x28] sm:$0xff] %v597
    %630 = vst [vmem:[#allocation5 + $0x30] sm:$0xff] %v598
    %631 = vst [vmem:[#allocation5 + $0x38] sm:$0xff] %v599
    %632 = vst [vmem:[#allocation5 + $0x40] sm:$0xff] %v600
    %633 = vst [vmem:[#allocation5 + $0x48] sm:$0xff] %v601
    %634 = vst [vmem:[#allocation5 + $0x50] sm:$0xff] %v602
    %635 = vst [vmem:[#allocation5 + $0x58] sm:$0xff] %v603
    %636 = vst [vmem:[#allocation5 + $0x60] sm:$0xff] %v604
    %637 = vst [vmem:[#allocation5 + $0x68] sm:$0xff] %v605
    %638 = vst [vmem:[#allocation5 + $0x70] sm:$0xff] %v606
    %639 = vst [vmem:[#allocation5 + $0x78] sm:$0xff] %v607
    %640 = vst [vmem:[#allocation5 + $0x80] sm:$0xff] %v608
    %641 = vst [vmem:[#allocation5 + $0x88] sm:$0xff] %v609
    %642 = vst [vmem:[#allocation5 + $0x90] sm:$0xff] %v610
    %643 = vst [vmem:[#allocation5 + $0x98] sm:$0xff] %v611
    %644 = vst [vmem:[#allocation5 + $0xa0] sm:$0xff] %v612
    %645 = vst [vmem:[#allocation5 + $0xa8] sm:$0xff] %v613
    %646 = vst [vmem:[#allocation5 + $0xb0] sm:$0xff] %v614
    %647 = vst [vmem:[#allocation5 + $0xb8] sm:$0xff] %v615
    %648 = vst [vmem:[#allocation5 + $0xc0] sm:$0xff] %v616
    %649 = vst [vmem:[#allocation5 + $0xc8] sm:$0xff] %v617
    %650 = vst [vmem:[#allocation5 + $0xd0] sm:$0xff] %v618
    %651 = vst [vmem:[#allocation5 + $0xd8] sm:$0xff] %v619
    %652 = vst [vmem:[#allocation5 + $0xe0] sm:$0xff] %v620
    %653 = vst [vmem:[#allocation5 + $0xe8] sm:$0xff] %v621
    %654 = vst [vmem:[#allocation5 + $0xf0] sm:$0xff] %v622
    %655 = vst [vmem:[#allocation5 + $0xf8] sm:$0xff] %v623
    %v656 = vmul.f32 %v25, 0.0625
    %v657 = vmul.f32 %v28, 0.0625
    %v658 = vmul.f32 %v31, 0.0625
    %v659 = vmul.f32 %v34, 0.0625
    %v660 = vmul.f32 %v37, 0.0625
    %v661 = vmul.f32 %v40, 0.0625
    %v662 = vmul.f32 %v43, 0.0625
    %v663 = vmul.f32 %v46, 0.0625
    %v664 = vmul.f32 %v49, 0.0625
    %v665 = vmul.f32 %v52, 0.0625
    %v666 = vmul.f32 %v55, 0.0625
    %v667 = vmul.f32 %v58, 0.0625
    %v668 = vmul.f32 %v61, 0.0625
    %v669 = vmul.f32 %v64, 0.0625
    %v670 = vmul.f32 %v67, 0.0625
    %v671 = vmul.f32 %v70, 0.0625
    %v720 = vrot.slane %v77, 1
    %v721 = vrot.slane %v78, 1
    %v722 = vsel %vm205, %v720, %v721
    %v723 = vrot.slane %v656, 1
    %v724 = vsel %vm205, %v721, %v723
    %v725 = vrot.slane %v79, 1
    %v726 = vrot.slane %v80, 1
    %v727 = vsel %vm205, %v725, %v726
    %v728 = vrot.slane %v657, 1
    %v729 = vsel %vm205, %v726, %v728
    %v730 = vrot.slane %v81, 1
    %v731 = vrot.slane %v82, 1
    %v732 = vsel %vm205, %v730, %v731
    %v733 = vrot.slane %v658, 1
    %v734 = vsel %vm205, %v731, %v733
    %v735 = vrot.slane %v83, 1
    %v736 = vrot.slane %v84, 1
    %v737 = vsel %vm205, %v735, %v736
    %v738 = vrot.slane %v659, 1
    %v739 = vsel %vm205, %v736, %v738
    %v740 = vrot.slane %v85, 1
    %v741 = vrot.slane %v86, 1
    %v742 = vsel %vm205, %v740, %v741
    %v743 = vrot.slane %v660, 1
    %v744 = vsel %vm205, %v741, %v743
    %v745 = vrot.slane %v87, 1
    %v746 = vrot.slane %v88, 1
    %v747 = vsel %vm205, %v745, %v746
    %v748 = vrot.slane %v661, 1
    %v749 = vsel %vm205, %v746, %v748
    %v750 = vrot.slane %v89, 1
    %v751 = vrot.slane %v90, 1
    %v752 = vsel %vm205, %v750, %v751
    %v753 = vrot.slane %v662, 1
    %v754 = vsel %vm205, %v751, %v753
    %v755 = vrot.slane %v91, 1
    %v756 = vrot.slane %v92, 1
    %v757 = vsel %vm205, %v755, %v756
    %v758 = vrot.slane %v663, 1
    %v759 = vsel %vm205, %v756, %v758
    %v760 = vrot.slane %v93, 1
    %v761 = vrot.slane %v94, 1
    %v762 = vsel %vm205, %v760, %v761
    %v763 = vrot.slane %v664, 1
    %v764 = vsel %vm205, %v761, %v763
    %v765 = vrot.slane %v95, 1
    %v766 = vrot.slane %v96, 1
    %v767 = vsel %vm205, %v765, %v766
    %v768 = vrot.slane %v665, 1
    %v769 = vsel %vm205, %v766, %v768
    %v770 = vrot.slane %v97, 1
    %v771 = vrot.slane %v98, 1
    %v772 = vsel %vm205, %v770, %v771
    %v773 = vrot.slane %v666, 1
    %v774 = vsel %vm205, %v771, %v773
    %v775 = vrot.slane %v99, 1
    %v776 = vrot.slane %v100, 1
    %v777 = vsel %vm205, %v775, %v776
    %v778 = vrot.slane %v667, 1
    %v779 = vsel %vm205, %v776, %v778
    %v780 = vrot.slane %v101, 1
    %v781 = vrot.slane %v102, 1
    %v782 = vsel %vm205, %v780, %v781
    %v783 = vrot.slane %v668, 1
    %v784 = vsel %vm205, %v781, %v783
    %v785 = vrot.slane %v103, 1
    %v786 = vrot.slane %v104, 1
    %v787 = vsel %vm205, %v785, %v786
    %v788 = vrot.slane %v669, 1
    %v789 = vsel %vm205, %v786, %v788
    %v790 = vrot.slane %v105, 1
    %v791 = vrot.slane %v106, 1
    %v792 = vsel %vm205, %v790, %v791
    %v793 = vrot.slane %v670, 1
    %v794 = vsel %vm205, %v791, %v793
    %v795 = vrot.slane %v107, 1
    %v796 = vrot.slane %v108, 1
    %v797 = vsel %vm205, %v795, %v796
    %v798 = vrot.slane %v671, 1
    %v799 = vsel %vm205, %v796, %v798
    %v848 = vadd.f32 %v109, %v722
    %v849 = vadd.f32 %v110, %v724
    %v850 = vadd.f32 %v111, %v723
    %v851 = vadd.f32 %v112, %v727
    %v852 = vadd.f32 %v113, %v729
    %v853 = vadd.f32 %v114, %v728
    %v854 = vadd.f32 %v115, %v732
    %v855 = vadd.f32 %v116, %v734
    %v856 = vadd.f32 %v117, %v733
    %v857 = vadd.f32 %v118, %v737
    %v858 = vadd.f32 %v119, %v739
    %v859 = vadd.f32 %v120, %v738
    %v860 = vadd.f32 %v121, %v742
    %v861 = vadd.f32 %v122, %v744
    %v862 = vadd.f32 %v123, %v743
    %v863 = vadd.f32 %v124, %v747
    %v864 = vadd.f32 %v125, %v749
    %v865 = vadd.f32 %v126, %v748
    %v866 = vadd.f32 %v127, %v752
    %v867 = vadd.f32 %v128, %v754
    %v868 = vadd.f32 %v129, %v753
    %v869 = vadd.f32 %v130, %v757
    %v870 = vadd.f32 %v131, %v759
    %v871 = vadd.f32 %v132, %v758
    %v872 = vadd.f32 %v133, %v762
    %v873 = vadd.f32 %v134, %v764
    %v874 = vadd.f32 %v135, %v763
    %v875 = vadd.f32 %v136, %v767
    %v876 = vadd.f32 %v137, %v769
    %v877 = vadd.f32 %v138, %v768
    %v878 = vadd.f32 %v139, %v772
    %v879 = vadd.f32 %v140, %v774
    %v880 = vadd.f32 %v141, %v773
    %v881 = vadd.f32 %v142, %v777
    %v882 = vadd.f32 %v143, %v779
    %v883 = vadd.f32 %v144, %v778
    %v884 = vadd.f32 %v145, %v782
    %v885 = vadd.f32 %v146, %v784
    %v886 = vadd.f32 %v147, %v783
    %v887 = vadd.f32 %v148, %v787
    %v888 = vadd.f32 %v149, %v789
    %v889 = vadd.f32 %v150, %v788
    %v890 = vadd.f32 %v151, %v792
    %v891 = vadd.f32 %v152, %v794
    %v892 = vadd.f32 %v153, %v793
    %v893 = vadd.f32 %v154, %v797
    %v894 = vadd.f32 %v155, %v799
    %v895 = vadd.f32 %v156, %v798
    %v896 = vadd.f32 %v848, %v384
    %v897 = vadd.f32 %v849, %v385
    %v898 = vadd.f32 %v850, %v386
    %v899 = vadd.f32 %v851, %v387
    %v900 = vadd.f32 %v852, %v388
    %v901 = vadd.f32 %v853, %v389
    %v902 = vadd.f32 %v854, %v390
    %v903 = vadd.f32 %v855, %v391
    %v904 = vadd.f32 %v856, %v392
    %v905 = vadd.f32 %v857, %v393
    %v906 = vadd.f32 %v858, %v394
    %v907 = vadd.f32 %v859, %v395
    %v908 = vadd.f32 %v860, %v396
    %v909 = vadd.f32 %v861, %v397
    %v910 = vadd.f32 %v862, %v398
    %v911 = vadd.f32 %v863, %v399
    %v912 = vadd.f32 %v864, %v400
    %v913 = vadd.f32 %v865, %v401
    %v914 = vadd.f32 %v866, %v402
    %v915 = vadd.f32 %v867, %v403
    %v916 = vadd.f32 %v868, %v404
    %v917 = vadd.f32 %v869, %v405
    %v918 = vadd.f32 %v870, %v406
    %v919 = vadd.f32 %v871, %v407
    %v920 = vadd.f32 %v872, %v408
    %v921 = vadd.f32 %v873, %v409
    %v922 = vadd.f32 %v874, %v410
    %v923 = vadd.f32 %v875, %v411
    %v924 = vadd.f32 %v876, %v412
    %v925 = vadd.f32 %v877, %v413
    %v926 = vadd.f32 %v878, %v414
    %v927 = vadd.f32 %v879, %v415
    %v928 = vadd.f32 %v880, %v416
    %v929 = vadd.f32 %v881, %v417
    %v930 = vadd.f32 %v882, %v418
    %v931 = vadd.f32 %v883, %v419
    %v932 = vadd.f32 %v884, %v420
    %v933 = vadd.f32 %v885, %v421
    %v934 = vadd.f32 %v886, %v422
    %v935 = vadd.f32 %v887, %v423
    %v936 = vadd.f32 %v888, %v424
    %v937 = vadd.f32 %v889, %v425
    %v938 = vadd.f32 %v890, %v426
    %v939 = vadd.f32 %v891, %v427
    %v940 = vadd.f32 %v892, %v428
    %v941 = vadd.f32 %v893, %v429
    %v942 = vadd.f32 %v894, %v430
    %v943 = vadd.f32 %v895, %v431
    %v944 = vmul.f32 %v73, 0.1875
    %v948 = vrot.slane %v350, 1
    %v949 = vrot.slane %v351, 1
    %v950 = vsel %vm205, %v948, %v949
    %v951 = vrot.slane %v944, 1
    %v952 = vsel %vm205, %v949, %v951
    %v971 = vadd.f32 %v896, %v213
    %v972 = vadd.f32 %v897, %v215
    %v973 = vadd.f32 %v898, %v214
    %v974 = vadd.f32 %v899, %v218
    %v975 = vadd.f32 %v900, %v220
    %v976 = vadd.f32 %v901, %v219
    %v977 = vadd.f32 %v902, %v223
    %v978 = vadd.f32 %v903, %v225
    %v979 = vadd.f32 %v904, %v224
    %v980 = vadd.f32 %v905, %v228
    %v981 = vadd.f32 %v906, %v230
    %v982 = vadd.f32 %v907, %v229
    %v983 = vadd.f32 %v908, %v233
    %v984 = vadd.f32 %v909, %v235
    %v985 = vadd.f32 %v910, %v234
    %v986 = vadd.f32 %v911, %v238
    %v987 = vadd.f32 %v912, %v240
    %v988 = vadd.f32 %v913, %v239
    %v989 = vadd.f32 %v914, %v243
    %v990 = vadd.f32 %v915, %v245
    %v991 = vadd.f32 %v916, %v244
    %v992 = vadd.f32 %v917, %v248
    %v993 = vadd.f32 %v918, %v250
    %v994 = vadd.f32 %v919, %v249
    %v995 = vadd.f32 %v920, %v253
    %v996 = vadd.f32 %v921, %v255
    %v997 = vadd.f32 %v922, %v254
    %v998 = vadd.f32 %v923, %v258
    %v999 = vadd.f32 %v924, %v260
    %v1000 = vadd.f32 %v925, %v259
    %v1001 = vadd.f32 %v926, %v263
    %v1002 = vadd.f32 %v927, %v265
    %v1003 = vadd.f32 %v928, %v264
    %v1004 = vadd.f32 %v929, %v268
    %v1005 = vadd.f32 %v930, %v270
    %v1006 = vadd.f32 %v931, %v269
    %v1007 = vadd.f32 %v932, %v273
    %v1008 = vadd.f32 %v933, %v275
    %v1009 = vadd.f32 %v934, %v274
    %v1010 = vadd.f32 %v935, %v278
    %v1011 = vadd.f32 %v936, %v280
    %v1012 = vadd.f32 %v937, %v279
    %v1013 = vadd.f32 %v938, %v283
    %v1014 = vadd.f32 %v939, %v285
    %v1015 = vadd.f32 %v940, %v284
    %v1016 = vadd.f32 %v941, %v950
    %v1017 = vadd.f32 %v942, %v952
    %v1018 = vadd.f32 %v943, %v951
    %s1019 = scalar_lea.vmem [#allocation5], 256
    %1020 = vst [vmem:[%s1019 - $0x1] sm:$0xfe] %v971
    %1021 = vst [vmem:[%s1019 + $0x7] sm:$0xff] %v972
    %1022 = vst [vmem:[%s1019 + $0xf] sm:$0x1] %v973
    %1023 = vst [vmem:[%s1019 + $0xf] sm:$0xfe] %v974
    %1024 = vst [vmem:[%s1019 + $0x17] sm:$0xff] %v975
    %1025 = vst [vmem:[%s1019 + $0x1f] sm:$0x1] %v976
    %1026 = vst [vmem:[%s1019 + $0x1f] sm:$0xfe] %v977
    %1027 = vst [vmem:[%s1019 + $0x27] sm:$0xff] %v978
    %1028 = vst [vmem:[%s1019 + $0x2f] sm:$0x1] %v979
    %1029 = vst [vmem:[%s1019 + $0x2f] sm:$0xfe] %v980
    %1030 = vst [vmem:[%s1019 + $0x37] sm:$0xff] %v981
    %1031 = vst [vmem:[%s1019 + $0x3f] sm:$0x1] %v982
    %1032 = vst [vmem:[%s1019 + $0x3f] sm:$0xfe] %v983
    %1033 = vst [vmem:[%s1019 + $0x47] sm:$0xff] %v984
    %1034 = vst [vmem:[%s1019 + $0x4f] sm:$0x1] %v985
    %1035 = vst [vmem:[%s1019 + $0x4f] sm:$0xfe] %v986
    %1036 = vst [vmem:[%s1019 + $0x57] sm:$0xff] %v987
    %1037 = vst [vmem:[%s1019 + $0x5f] sm:$0x1] %v988
    %1038 = vst [vmem:[%s1019 + $0x5f] sm:$0xfe] %v989
    %1039 = vst [vmem:[%s1019 + $0x67] sm:$0xff] %v990
    %1040 = vst [vmem:[%s1019 + $0x6f] sm:$0x1] %v991
    %1041 = vst [vmem:[%s1019 + $0x6f] sm:$0xfe] %v992
    %1042 = vst [vmem:[%s1019 + $0x77] sm:$0xff] %v993
    %1043 = vst [vmem:[%s1019 + $0x7f] sm:$0x1] %v994
    %1044 = vst [vmem:[%s1019 + $0x7f] sm:$0xfe] %v995
    %1045 = vst [vmem:[%s1019 + $0x87] sm:$0xff] %v996
    %1046 = vst [vmem:[%s1019 + $0x8f] sm:$0x1] %v997
    %1047 = vst [vmem:[%s1019 + $0x8f] sm:$0xfe] %v998
    %1048 = vst [vmem:[%s1019 + $0x97] sm:$0xff] %v999
    %1049 = vst [vmem:[%s1019 + $0x9f] sm:$0x1] %v1000
    %1050 = vst [vmem:[%s1019 + $0x9f] sm:$0xfe] %v1001
    %1051 = vst [vmem:[%s1019 + $0xa7] sm:$0xff] %v1002
    %1052 = vst [vmem:[%s1019 + $0xaf] sm:$0x1] %v1003
    %1053 = vst [vmem:[%s1019 + $0xaf] sm:$0xfe] %v1004
    %1054 = vst [vmem:[%s1019 + $0xb7] sm:$0xff] %v1005
    %1055 = vst [vmem:[%s1019 + $0xbf] sm:$0x1] %v1006
    %1056 = vst [vmem:[%s1019 + $0xbf] sm:$0xfe] %v1007
    %1057 = vst [vmem:[%s1019 + $0xc7] sm:$0xff] %v1008
    %1058 = vst [vmem:[%s1019 + $0xcf] sm:$0x1] %v1009
    %1059 = vst [vmem:[%s1019 + $0xcf] sm:$0xfe] %v1010
    %1060 = vst [vmem:[%s1019 + $0xd7] sm:$0xff] %v1011
    %1061 = vst [vmem:[%s1019 + $0xdf] sm:$0x1] %v1012
    %1062 = vst [vmem:[%s1019 + $0xdf] sm:$0xfe] %v1013
    %1063 = vst [vmem:[%s1019 + $0xe7] sm:$0xff] %v1014
    %1064 = vst [vmem:[%s1019 + $0xef] sm:$0x1] %v1015
    %1065 = vst [vmem:[%s1019 + $0xef] sm:$0xfe] %v1016
    %1066 = vst [vmem:[%s1019 + $0xf7] sm:$0xff] %v1017
    %1067 = vst [vmem:[%s1019 + $0xff] sm:$0x1] %v1018
    %v1068 = vadd.f32 %v112, %v482
    %v1069 = vadd.f32 %v113, %v484
    %v1070 = vadd.f32 %v115, %v487
    %v1071 = vadd.f32 %v116, %v489
    %v1072 = vadd.f32 %v118, %v492
    %v1073 = vadd.f32 %v119, %v494
    %v1074 = vadd.f32 %v121, %v497
    %v1075 = vadd.f32 %v122, %v499
    %v1076 = vadd.f32 %v124, %v502
    %v1077 = vadd.f32 %v125, %v504
    %v1078 = vadd.f32 %v127, %v507
    %v1079 = vadd.f32 %v128, %v509
    %v1080 = vadd.f32 %v130, %v512
    %v1081 = vadd.f32 %v131, %v514
    %v1082 = vadd.f32 %v133, %v517
    %v1083 = vadd.f32 %v134, %v519
    %v1084 = vadd.f32 %v136, %v522
    %v1085 = vadd.f32 %v137, %v524
    %v1086 = vadd.f32 %v139, %v527
    %v1087 = vadd.f32 %v140, %v529
    %v1088 = vadd.f32 %v142, %v532
    %v1089 = vadd.f32 %v143, %v534
    %v1090 = vadd.f32 %v145, %v537
    %v1091 = vadd.f32 %v146, %v539
    %v1092 = vadd.f32 %v148, %v542
    %v1093 = vadd.f32 %v149, %v544
    %v1094 = vadd.f32 %v151, %v547
    %v1095 = vadd.f32 %v152, %v549
    %v1096 = vadd.f32 %v154, %v552
    %v1097 = vadd.f32 %v155, %v554
    %v1098 = vadd.f32 %v350, %v557
    %v1099 = vadd.f32 %v351, %v559
    %v1100 = vmul.f32 %v71, 0.0625
    %v1101 = vmul.f32 %v72, 0.0625
    %v1102 = vmul.f32 %v74, 0.0625
    %v1103 = vmul.f32 %v75, 0.0625
    %v1104 = vadd.f32 %v1068, %v81
    %v1105 = vadd.f32 %v1069, %v82
    %v1106 = vadd.f32 %v1070, %v83
    %v1107 = vadd.f32 %v1071, %v84
    %v1108 = vadd.f32 %v1072, %v85
    %v1109 = vadd.f32 %v1073, %v86
    %v1110 = vadd.f32 %v1074, %v87
    %v1111 = vadd.f32 %v1075, %v88
    %v1112 = vadd.f32 %v1076, %v89
    %v1113 = vadd.f32 %v1077, %v90
    %v1114 = vadd.f32 %v1078, %v91
    %v1115 = vadd.f32 %v1079, %v92
    %v1116 = vadd.f32 %v1080, %v93
    %v1117 = vadd.f32 %v1081, %v94
    %v1118 = vadd.f32 %v1082, %v95
    %v1119 = vadd.f32 %v1083, %v96
    %v1120 = vadd.f32 %v1084, %v97
    %v1121 = vadd.f32 %v1085, %v98
    %v1122 = vadd.f32 %v1086, %v99
    %v1123 = vadd.f32 %v1087, %v100
    %v1124 = vadd.f32 %v1088, %v101
    %v1125 = vadd.f32 %v1089, %v102
    %v1126 = vadd.f32 %v1090, %v103
    %v1127 = vadd.f32 %v1091, %v104
    %v1128 = vadd.f32 %v1092, %v105
    %v1129 = vadd.f32 %v1093, %v106
    %v1130 = vadd.f32 %v1094, %v107
    %v1131 = vadd.f32 %v1095, %v108
    %v1132 = vadd.f32 %v1096, %v1100
    %v1133 = vadd.f32 %v1097, %v1101
    %v1134 = vadd.f32 %v1098, %v1102
    %v1135 = vadd.f32 %v1099, %v1103
    %v1136 = vmul.f32 %v74, 0.1875
    %v1137 = vmul.f32 %v75, 0.1875
    %v1138 = vmul.f32 %v76, 0.1875
    %v1142 = vrot.slane %v1136, 1
    %v1143 = vrot.slane %v1137, 1
    %v1144 = vsel %vm205, %v1142, %v1143
    %v1145 = vrot.slane %v1138, 1
    %v1146 = vsel %vm205, %v1143, %v1145
    %v1149 = vadd.f32 %v1104, %v218
    %v1150 = vadd.f32 %v1105, %v220
    %v1151 = vadd.f32 %v1106, %v223
    %v1152 = vadd.f32 %v1107, %v225
    %v1153 = vadd.f32 %v1108, %v228
    %v1154 = vadd.f32 %v1109, %v230
    %v1155 = vadd.f32 %v1110, %v233
    %v1156 = vadd.f32 %v1111, %v235
    %v1157 = vadd.f32 %v1112, %v238
    %v1158 = vadd.f32 %v1113, %v240
    %v1159 = vadd.f32 %v1114, %v243
    %v1160 = vadd.f32 %v1115, %v245
    %v1161 = vadd.f32 %v1116, %v248
    %v1162 = vadd.f32 %v1117, %v250
    %v1163 = vadd.f32 %v1118, %v253
    %v1164 = vadd.f32 %v1119, %v255
    %v1165 = vadd.f32 %v1120, %v258
    %v1166 = vadd.f32 %v1121, %v260
    %v1167 = vadd.f32 %v1122, %v263
    %v1168 = vadd.f32 %v1123, %v265
    %v1169 = vadd.f32 %v1124, %v268
    %v1170 = vadd.f32 %v1125, %v270
    %v1171 = vadd.f32 %v1126, %v273
    %v1172 = vadd.f32 %v1127, %v275
    %v1173 = vadd.f32 %v1128, %v278
    %v1174 = vadd.f32 %v1129, %v280
    %v1175 = vadd.f32 %v1130, %v283
    %v1176 = vadd.f32 %v1131, %v285
    %v1177 = vadd.f32 %v1132, %v950
    %v1178 = vadd.f32 %v1133, %v952
    %v1179 = vadd.f32 %v1134, %v1144
    %v1180 = vadd.f32 %v1135, %v1146
    %s1181 = scalar_lea.vmem [#allocation5], 512
    %1182 = vst [vmem:[%s1181] sm:$0xff] %v1149
    %1183 = vst [vmem:[%s1181 + $0x8] sm:$0xff] %v1150
    %1184 = vst [vmem:[%s1181 + $0x10] sm:$0xff] %v1151
    %1185 = vst [vmem:[%s1181 + $0x18] sm:$0xff] %v1152
    %1186 = vst [vmem:[%s1181 + $0x20] sm:$0xff] %v1153
    %1187 = vst [vmem:[%s1181 + $0x28] sm:$0xff] %v1154
    %1188 = vst [vmem:[%s1181 + $0x30] sm:$0xff] %v1155
    %1189 = vst [vmem:[%s1181 + $0x38] sm:$0xff] %v1156
    %1190 = vst [vmem:[%s1181 + $0x40] sm:$0xff] %v1157
    %1191 = vst [vmem:[%s1181 + $0x48] sm:$0xff] %v1158
    %1192 = vst [vmem:[%s1181 + $0x50] sm:$0xff] %v1159
    %1193 = vst [vmem:[%s1181 + $0x58] sm:$0xff] %v1160
    %1194 = vst [vmem:[%s1181 + $0x60] sm:$0xff] %v1161
    %1195 = vst [vmem:[%s1181 + $0x68] sm:$0xff] %v1162
    %1196 = vst [vmem:[%s1181 + $0x70] sm:$0xff] %v1163
    %1197 = vst [vmem:[%s1181 + $0x78] sm:$0xff] %v1164
    %1198 = vst [vmem:[%s1181 + $0x80] sm:$0xff] %v1165
    %1199 = vst [vmem:[%s1181 + $0x88] sm:$0xff] %v1166
    %1200 = vst [vmem:[%s1181 + $0x90] sm:$0xff] %v1167
    %1201 = vst [vmem:[%s1181 + $0x98] sm:$0xff] %v1168
    %1202 = vst [vmem:[%s1181 + $0xa0] sm:$0xff] %v1169
    %1203 = vst [vmem:[%s1181 + $0xa8] sm:$0xff] %v1170
    %1204 = vst [vmem:[%s1181 + $0xb0] sm:$0xff] %v1171
    %1205 = vst [vmem:[%s1181 + $0xb8] sm:$0xff] %v1172
    %1206 = vst [vmem:[%s1181 + $0xc0] sm:$0xff] %v1173
    %1207 = vst [vmem:[%s1181 + $0xc8] sm:$0xff] %v1174
    %1208 = vst [vmem:[%s1181 + $0xd0] sm:$0xff] %v1175
    %1209 = vst [vmem:[%s1181 + $0xd8] sm:$0xff] %v1176
    %1210 = vst [vmem:[%s1181 + $0xe0] sm:$0xff] %v1177
    %1211 = vst [vmem:[%s1181 + $0xe8] sm:$0xff] %v1178
    %1212 = vst [vmem:[%s1181 + $0xf0] sm:$0xff] %v1179
    %1213 = vst [vmem:[%s1181 + $0xf8] sm:$0xff] %v1180
    %v1214 = vadd.f32 %v384, %v213
    %v1215 = vadd.f32 %v385, %v215
    %v1216 = vadd.f32 %v386, %v214
    %v1217 = vadd.f32 %v387, %v218
    %v1218 = vadd.f32 %v388, %v220
    %v1219 = vadd.f32 %v389, %v219
    %v1220 = vadd.f32 %v390, %v223
    %v1221 = vadd.f32 %v391, %v225
    %v1222 = vadd.f32 %v392, %v224
    %v1223 = vadd.f32 %v393, %v228
    %v1224 = vadd.f32 %v394, %v230
    %v1225 = vadd.f32 %v395, %v229
    %v1226 = vadd.f32 %v396, %v233
    %v1227 = vadd.f32 %v397, %v235
    %v1228 = vadd.f32 %v398, %v234
    %v1229 = vadd.f32 %v399, %v238
    %v1230 = vadd.f32 %v400, %v240
    %v1231 = vadd.f32 %v401, %v239
    %v1232 = vadd.f32 %v402, %v243
    %v1233 = vadd.f32 %v403, %v245
    %v1234 = vadd.f32 %v404, %v244
    %v1235 = vadd.f32 %v405, %v248
    %v1236 = vadd.f32 %v406, %v250
    %v1237 = vadd.f32 %v407, %v249
    %v1238 = vadd.f32 %v408, %v253
    %v1239 = vadd.f32 %v409, %v255
    %v1240 = vadd.f32 %v410, %v254
    %v1241 = vadd.f32 %v411, %v258
    %v1242 = vadd.f32 %v412, %v260
    %v1243 = vadd.f32 %v413, %v259
    %v1244 = vadd.f32 %v414, %v263
    %v1245 = vadd.f32 %v415, %v265
    %v1246 = vadd.f32 %v416, %v264
    %v1247 = vadd.f32 %v417, %v268
    %v1248 = vadd.f32 %v418, %v270
    %v1249 = vadd.f32 %v419, %v269
    %v1250 = vadd.f32 %v420, %v273
    %v1251 = vadd.f32 %v421, %v275
    %v1252 = vadd.f32 %v422, %v274
    %v1253 = vadd.f32 %v423, %v278
    %v1254 = vadd.f32 %v424, %v280
    %v1255 = vadd.f32 %v425, %v279
    %v1256 = vadd.f32 %v426, %v283
    %v1257 = vadd.f32 %v427, %v285
    %v1258 = vadd.f32 %v428, %v284
    %v1259 = vadd.f32 %v429, %v950
    %v1260 = vadd.f32 %v430, %v952
    %v1261 = vadd.f32 %v431, %v951
    %v1262 = vadd.f32 %v1214, %v115
    %v1263 = vadd.f32 %v1215, %v116
    %v1264 = vadd.f32 %v1216, %v117
    %v1265 = vadd.f32 %v1217, %v118
    %v1266 = vadd.f32 %v1218, %v119
    %v1267 = vadd.f32 %v1219, %v120
    %v1268 = vadd.f32 %v1220, %v121
    %v1269 = vadd.f32 %v1221, %v122
    %v1270 = vadd.f32 %v1222, %v123
    %v1271 = vadd.f32 %v1223, %v124
    %v1272 = vadd.f32 %v1224, %v125
    %v1273 = vadd.f32 %v1225, %v126
    %v1274 = vadd.f32 %v1226, %v127
    %v1275 = vadd.f32 %v1227, %v128
    %v1276 = vadd.f32 %v1228, %v129
    %v1277 = vadd.f32 %v1229, %v130
    %v1278 = vadd.f32 %v1230, %v131
    %v1279 = vadd.f32 %v1231, %v132
    %v1280 = vadd.f32 %v1232, %v133
    %v1281 = vadd.f32 %v1233, %v134
    %v1282 = vadd.f32 %v1234, %v135
    %v1283 = vadd.f32 %v1235, %v136
    %v1284 = vadd.f32 %v1236, %v137
    %v1285 = vadd.f32 %v1237, %v138
    %v1286 = vadd.f32 %v1238, %v139
    %v1287 = vadd.f32 %v1239, %v140
    %v1288 = vadd.f32 %v1240, %v141
    %v1289 = vadd.f32 %v1241, %v142
    %v1290 = vadd.f32 %v1242, %v143
    %v1291 = vadd.f32 %v1243, %v144
    %v1292 = vadd.f32 %v1244, %v145
    %v1293 = vadd.f32 %v1245, %v146
    %v1294 = vadd.f32 %v1246, %v147
    %v1295 = vadd.f32 %v1247, %v148
    %v1296 = vadd.f32 %v1248, %v149
    %v1297 = vadd.f32 %v1249, %v150
    %v1298 = vadd.f32 %v1250, %v151
    %v1299 = vadd.f32 %v1251, %v152
    %v1300 = vadd.f32 %v1252, %v153
    %v1301 = vadd.f32 %v1253, %v154
    %v1302 = vadd.f32 %v1254, %v155
    %v1303 = vadd.f32 %v1255, %v156
    %v1304 = vadd.f32 %v1256, %v350
    %v1305 = vadd.f32 %v1257, %v351
    %v1306 = vadd.f32 %v1258, %v944
    %v1307 = vadd.f32 %v1259, %v1136
    %v1308 = vadd.f32 %v1260, %v1137
    %v1309 = vadd.f32 %v1261, %v1138
    %v1310 = vmul.f32 %v73, 0.0625
    %v1311 = vmul.f32 %v76, 0.0625
    %v1318 = vrot.slane %v1100, 1
    %v1319 = vrot.slane %v1101, 1
    %v1320 = vsel %vm205, %v1318, %v1319
    %v1321 = vrot.slane %v1310, 1
    %v1322 = vsel %vm205, %v1319, %v1321
    %v1323 = vrot.slane %v1102, 1
    %v1324 = vrot.slane %v1103, 1
    %v1325 = vsel %vm205, %v1323, %v1324
    %v1326 = vrot.slane %v1311, 1
    %v1327 = vsel %vm205, %v1324, %v1326
    %v1334 = vadd.f32 %v1262, %v732
    %v1335 = vadd.f32 %v1263, %v734
    %v1336 = vadd.f32 %v1264, %v733
    %v1337 = vadd.f32 %v1265, %v737
    %v1338 = vadd.f32 %v1266, %v739
    %v1339 = vadd.f32 %v1267, %v738
    %v1340 = vadd.f32 %v1268, %v742
    %v1341 = vadd.f32 %v1269, %v744
    %v1342 = vadd.f32 %v1270, %v743
    %v1343 = vadd.f32 %v1271, %v747
    %v1344 = vadd.f32 %v1272, %v749
    %v1345 = vadd.f32 %v1273, %v748
    %v1346 = vadd.f32 %v1274, %v752
    %v1347 = vadd.f32 %v1275, %v754
    %v1348 = vadd.f32 %v1276, %v753
    %v1349 = vadd.f32 %v1277, %v757
    %v1350 = vadd.f32 %v1278, %v759
    %v1351 = vadd.f32 %v1279, %v758
    %v1352 = vadd.f32 %v1280, %v762
    %v1353 = vadd.f32 %v1281, %v764
    %v1354 = vadd.f32 %v1282, %v763
    %v1355 = vadd.f32 %v1283, %v767
    %v1356 = vadd.f32 %v1284, %v769
    %v1357 = vadd.f32 %v1285, %v768
    %v1358 = vadd.f32 %v1286, %v772
    %v1359 = vadd.f32 %v1287, %v774
    %v1360 = vadd.f32 %v1288, %v773
    %v1361 = vadd.f32 %v1289, %v777
    %v1362 = vadd.f32 %v1290, %v779
    %v1363 = vadd.f32 %v1291, %v778
    %v1364 = vadd.f32 %v1292, %v782
    %v1365 = vadd.f32 %v1293, %v784
    %v1366 = vadd.f32 %v1294, %v783
    %v1367 = vadd.f32 %v1295, %v787
    %v1368 = vadd.f32 %v1296, %v789
    %v1369 = vadd.f32 %v1297, %v788
    %v1370 = vadd.f32 %v1298, %v792
    %v1371 = vadd.f32 %v1299, %v794
    %v1372 = vadd.f32 %v1300, %v793
    %v1373 = vadd.f32 %v1301, %v797
    %v1374 = vadd.f32 %v1302, %v799
    %v1375 = vadd.f32 %v1303, %v798
    %v1376 = vadd.f32 %v1304, %v1320
    %v1377 = vadd.f32 %v1305, %v1322
    %v1378 = vadd.f32 %v1306, %v1321
    %v1379 = vadd.f32 %v1307, %v1325
    %v1380 = vadd.f32 %v1308, %v1327
    %v1381 = vadd.f32 %v1309, %v1326
    %s1382 = scalar_lea.vmem [#allocation5], 768
    %1383 = vst [vmem:[%s1382 - $0x1] sm:$0xfe] %v1334
    %1384 = vst [vmem:[%s1382 + $0x7] sm:$0xff] %v1335
    %1385 = vst [vmem:[%s1382 + $0xf] sm:$0x1] %v1336
    %1386 = vst [vmem:[%s1382 + $0xf] sm:$0xfe] %v1337
    %1387 = vst [vmem:[%s1382 + $0x17] sm:$0xff] %v1338
    %1388 = vst [vmem:[%s1382 + $0x1f] sm:$0x1] %v1339
    %1389 = vst [vmem:[%s1382 + $0x1f] sm:$0xfe] %v1340
    %1390 = vst [vmem:[%s1382 + $0x27] sm:$0xff] %v1341
    %1391 = vst [vmem:[%s1382 + $0x2f] sm:$0x1] %v1342
    %1392 = vst [vmem:[%s1382 + $0x2f] sm:$0xfe] %v1343
    %1393 = vst [vmem:[%s1382 + $0x37] sm:$0xff] %v1344
    %1394 = vst [vmem:[%s1382 + $0x3f] sm:$0x1] %v1345
    %1395 = vst [vmem:[%s1382 + $0x3f] sm:$0xfe] %v1346
    %1396 = vst [vmem:[%s1382 + $0x47] sm:$0xff] %v1347
    %1397 = vst [vmem:[%s1382 + $0x4f] sm:$0x1] %v1348
    %1398 = vst [vmem:[%s1382 + $0x4f] sm:$0xfe] %v1349
    %1399 = vst [vmem:[%s1382 + $0x57] sm:$0xff] %v1350
    %1400 = vst [vmem:[%s1382 + $0x5f] sm:$0x1] %v1351
    %1401 = vst [vmem:[%s1382 + $0x5f] sm:$0xfe] %v1352
    %1402 = vst [vmem:[%s1382 + $0x67] sm:$0xff] %v1353
    %1403 = vst [vmem:[%s1382 + $0x6f] sm:$0x1] %v1354
    %1404 = vst [vmem:[%s1382 + $0x6f] sm:$0xfe] %v1355
    %1405 = vst [vmem:[%s1382 + $0x77] sm:$0xff] %v1356
    %1406 = vst [vmem:[%s1382 + $0x7f] sm:$0x1] %v1357
    %1407 = vst [vmem:[%s1382 + $0x7f] sm:$0xfe] %v1358
    %1408 = vst [vmem:[%s1382 + $0x87] sm:$0xff] %v1359
    %1409 = vst [vmem:[%s1382 + $0x8f] sm:$0x1] %v1360
    %1410 = vst [vmem:[%s1382 + $0x8f] sm:$0xfe] %v1361
    %1411 = vst [vmem:[%s1382 + $0x97] sm:$0xff] %v1362
    %1412 = vst [vmem:[%s1382 + $0x9f] sm:$0x1] %v1363
    %1413 = vst [vmem:[%s1382 + $0x9f] sm:$0xfe] %v1364
    %1414 = vst [vmem:[%s1382 + $0xa7] sm:$0xff] %v1365
    %1415 = vst [vmem:[%s1382 + $0xaf] sm:$0x1] %v1366
    %1416 = vst [vmem:[%s1382 + $0xaf] sm:$0xfe] %v1367
    %1417 = vst [vmem:[%s1382 + $0xb7] sm:$0xff] %v1368
    %1418 = vst [vmem:[%s1382 + $0xbf] sm:$0x1] %v1369
    %1419 = vst [vmem:[%s1382 + $0xbf] sm:$0xfe] %v1370
    %1420 = vst [vmem:[%s1382 + $0xc7] sm:$0xff] %v1371
    %1421 = vst [vmem:[%s1382 + $0xcf] sm:$0x1] %v1372
    %1422 = vst [vmem:[%s1382 + $0xcf] sm:$0xfe] %v1373
    %1423 = vst [vmem:[%s1382 + $0xd7] sm:$0xff] %v1374
    %1424 = vst [vmem:[%s1382 + $0xdf] sm:$0x1] %v1375
    %1425 = vst [vmem:[%s1382 + $0xdf] sm:$0xfe] %v1376
    %1426 = vst [vmem:[%s1382 + $0xe7] sm:$0xff] %v1377
    %1427 = vst [vmem:[%s1382 + $0xef] sm:$0x1] %v1378
    %1428 = vst [vmem:[%s1382 + $0xef] sm:$0xfe] %v1379
    %1429 = vst [vmem:[%s1382 + $0xf7] sm:$0xff] %v1380
    %1430 = vst [vmem:[%s1382 + $0xff] sm:$0x1] %v1381
    // Predicated region
    $region10: #{tpu_custom_call.1} parent=1 // pred_check
      _
    $region11: #{tpu_custom_call.1} parent=1 // pred_check_branch
      %1432 = sbr.rel (0) target = $region13
    $region12: #{tpu_custom_call.1} parent=1 // pred_region
      %s1434 = ssub.s32 16384, 16384
      %1435 = vsyncadd [#allocation4], %s1434
      %s1436 = sshll.u32 [#allocation5], 4
      %s1437 = int_to_ptr.vmem [resolvable:$true] %s1436
      %1442 = dma.vmem_to_hbm [thread:$0]  %s1437, 16384, %s1, [#allocation4], 128, 128, 8
    $region13: #{tpu_custom_call.1} parent=1 // pred_fallthru
      _
    // Predicated region
    $region14: #{tpu_custom_call.1} parent=1 // pred_check
      _
    $region15: #{tpu_custom_call.1} parent=1 // pred_check_branch
      %1444 = sbr.rel (0) target = $region17
    $region16: #{tpu_custom_call.1} parent=1 // pred_region
      %1445 = dma.done [#allocation4], 16384
    $region17: #{tpu_custom_call.1} parent=1 // pred_fallthru
      _
    %1446 = vsyncpa [#allocation3], 1
    %1447 = vsyncpa [#allocation4], 1

</llo_original>
